<compile_context>
chip_gen: v7x
topology: tpu7x:2x2x1
jax: 0.10.0
libtpu: 0.0.40
codegen_flags: <defaults>
</compile_context>

<pallas_src>
import jax
import jax.numpy as jnp
from jax import lax
from jax.experimental import pallas as pl
from jax.experimental.pallas import tpu as pltpu


def _round_up(n, m):
    return ((n + m - 1) // m) * m


def _fold_kernel(wv_ref, bv_ref, w_ref, wc_ref, bc_ref, veff_ref, beff_ref):
    """One-time parameter fold.

    Shapes (VMEM):
      wv_ref  : [D, F]
      bv_ref  : [1, F]
      w_ref   : [1, F]
      wc_ref  : [1, D]
      bc_ref  : [1, 1]
      veff_ref: [1, D]   v_eff = W_V @ w + w_c  (lane-dense row)
      beff_ref: [1, 1]   b_eff = b_V . w + b_c
    """
    w_row = w_ref[...]                                          # [1, F]
    # (1, F) . (D, F)^T -> (1, D): contract the F (lane) axis of both.
    v_eff = lax.dot_general(
        w_row, wv_ref[...],
        dimension_numbers=(((1,), (1,)), ((), ())),
        preferred_element_type=jnp.float32)                     # [1, D]
    veff_ref[...] = (v_eff + wc_ref[...]).astype(veff_ref.dtype)
    beff_ref[...] = (jnp.sum(bv_ref[...] * w_row, axis=-1, keepdims=True)
                     + bc_ref[...]).astype(beff_ref.dtype)


def _matvec_kernel(x_ref, veff_ref, beff_ref, o_ref):
    """Per-tile forward: o[1, TB] = v_eff[1, D] . x[TB, D]^T + b_eff."""
    y = lax.dot_general(
        veff_ref[...], x_ref[...],
        dimension_numbers=(((1,), (1,)), ((), ())),
        preferred_element_type=jnp.float32)                     # [1, TB]
    o_ref[...] = (y + beff_ref[...]).astype(o_ref.dtype)        # lane-dense store


def task_linear_forward(x, W_V, b_V, w, w_c=None, b_c=None, *, block_b=1024):
    """Fused TaskLinearModel forward.

    x   : [B, D] f32
    W_V : [D, F] f32,  b_V : [F] f32   (the V affine head)
    w   : [F] f32                      (task weight vector)
    w_c : [D] f32 or None, b_c : [] f32 or None   (optional c affine head)
    returns y : [B] f32
    """
    B, D = x.shape
    F = W_V.shape[1]
    dtype = jnp.float32

    if w_c is None:                       # c=None in the module -> add nothing
        w_c = jnp.zeros((D,), dtype)
    if b_c is None:
        b_c = jnp.zeros((), dtype)

    # ---- one-time parameter fold (tiny, grid-less Pallas call) -------------
    v_eff, b_eff = pl.pallas_call(
        _fold_kernel,
        out_shape=(jax.ShapeDtypeStruct((1, D), dtype),
                   jax.ShapeDtypeStruct((1, 1), dtype)),
        in_specs=[pl.BlockSpec(memory_space=pltpu.VMEM)] * 5,
        out_specs=(pl.BlockSpec(memory_space=pltpu.VMEM),
                   pl.BlockSpec(memory_space=pltpu.VMEM)),
    )(
        W_V.astype(dtype),
        b_V.reshape(1, F).astype(dtype),
        w.reshape(1, F).astype(dtype),
        w_c.reshape(1, D).astype(dtype),
        b_c.reshape(1, 1).astype(dtype),
    )

    # ---- batched matvec, tiled over B --------------------------------------
    if B <= block_b:
        tb = _round_up(B, 8)              # single full block (any lane count OK)
    else:
        tb = _round_up(block_b, 128)      # lane-dense output blocks of width tb
    b_pad = _round_up(B, tb)
    x_in = x.astype(dtype)
    if b_pad != B:
        x_in = jnp.pad(x_in, ((0, b_pad - B), (0, 0)))   # guard partial tile

    y_row = pl.pallas_call(
        _matvec_kernel,
        out_shape=jax.ShapeDtypeStruct((1, b_pad), dtype),
        grid_spec=pltpu.PrefetchScalarGridSpec(
            num_scalar_prefetch=0,
            grid=(b_pad // tb,),
            in_specs=[
                pl.BlockSpec((tb, D), lambda i: (i, 0)),   # x row tile (pipelined)
                pl.BlockSpec((1, D), lambda i: (0, 0)),    # v_eff, resident
                pl.BlockSpec((1, 1), lambda i: (0, 0)),    # b_eff, resident
            ],
            out_specs=pl.BlockSpec((1, tb), lambda i: (0, i)),  # lane-dense out
        ),
        compiler_params=pltpu.CompilerParams(
            dimension_semantics=("parallel",)),
    )(x_in, v_eff, b_eff)

    return y_row[0, :B]


def task_linear_reference(x, W_V, b_V, w, w_c=None, b_c=None):
    V = x @ W_V + b_V
    y = V @ w
    if w_c is not None:
        y = y + (x @ w_c + b_c)
    return y


if __name__ == "__main__":
    # Small deterministic shapes; B is deliberately NOT a multiple of the row
    # tile to exercise the padding path (block_b=128 -> grid of 3 tiles).
    B, D, F = 300, 128, 256
    key = jax.random.PRNGKey(0)
    kx, kwv, kbv, kw, kwc, kbc = jax.random.split(key, 6)

    x   = jax.random.normal(kx,  (B, D), dtype=jnp.float32)
    W_V = jax.random.normal(kwv, (D, F), dtype=jnp.float32) * 0.1
    b_V = jax.random.normal(kbv, (F,),   dtype=jnp.float32) * 0.1
    w   = jax.random.normal(kw,  (F,),   dtype=jnp.float32) * 0.1
    w_c = jax.random.normal(kwc, (D,),   dtype=jnp.float32) * 0.1
    b_c = jax.random.normal(kbc, (),     dtype=jnp.float32) * 0.1

    y = task_linear_forward(x, W_V, b_V, w, w_c, b_c, block_b=128)
    y = jax.block_until_ready(y)

    y_ref = task_linear_reference(x, W_V, b_V, w, w_c, b_c)
    assert y.shape == (B,)
    assert jnp.allclose(y, y_ref, atol=1e-4, rtol=1e-4), (
        float(jnp.max(jnp.abs(y - y_ref))))

    print("KERNEL_OK")
</pallas_src>

<mosaic_0001>
module attributes {stable_mosaic.version = 11 : i64} {
  func.func @_fold_kernel(%arg0: memref<128x256xf32, #tpu.memory_space<vmem>>, %arg1: memref<1x256xf32, #tpu.memory_space<vmem>>, %arg2: memref<1x256xf32, #tpu.memory_space<vmem>>, %arg3: memref<1x128xf32, #tpu.memory_space<vmem>>, %arg4: memref<1x1xf32, #tpu.memory_space<vmem>>, %arg5: memref<1x128xf32, #tpu.memory_space<vmem>>, %arg6: memref<1x1xf32, #tpu.memory_space<vmem>>) attributes {dimension_semantics = [], scalar_prefetch = 0 : i64, scratch_operands = 0 : i64, tpu.core_type = #tpu.core_type<tc>} {
    %c0 = arith.constant 0 : index
    %c0_0 = arith.constant 0 : index
    %0 = vector.load %arg2[%c0, %c0_0] : memref<1x256xf32, #tpu.memory_space<vmem>>, vector<1x256xf32>
    %c0_1 = arith.constant 0 : index
    %c0_2 = arith.constant 0 : index
    %1 = vector.load %arg0[%c0_1, %c0_2] : memref<128x256xf32, #tpu.memory_space<vmem>>, vector<128x256xf32>
    %cst = arith.constant dense<0.000000e+00> : vector<1x128xf32>
    %2 = tpu.matmul %0, %1, %cst {dimension_numbers = #tpu.dot_dimension_numbers<[1], [1], [0], [0], [0, 0, 1, 0], [], []>} : vector<1x256xf32>, vector<128x256xf32>, vector<1x128xf32> -> vector<1x128xf32>
    %c0_3 = arith.constant 0 : index
    %c0_4 = arith.constant 0 : index
    %3 = vector.load %arg3[%c0_3, %c0_4] : memref<1x128xf32, #tpu.memory_space<vmem>>, vector<1x128xf32>
    %4 = arith.addf %2, %3 : vector<1x128xf32>
    %c0_5 = arith.constant 0 : index
    %c0_6 = arith.constant 0 : index
    %5 = vector.load %arg5[%c0_5, %c0_6] : memref<1x128xf32, #tpu.memory_space<vmem>>, vector<1x128xf32>
    tpu.vector_store %arg5[%c0_5, %c0_6], %4 {strides = array<i32>} : memref<1x128xf32, #tpu.memory_space<vmem>>, vector<1x128xf32>,
    %c0_7 = arith.constant 0 : index
    %c0_8 = arith.constant 0 : index
    %6 = vector.load %arg1[%c0_7, %c0_8] : memref<1x256xf32, #tpu.memory_space<vmem>>, vector<1x256xf32>
    %7 = arith.mulf %6, %0 : vector<1x256xf32>
    %cst_9 = arith.constant dense<0.000000e+00> : vector<1xf32>
    %8 = vector.multi_reduction <add>, %7, %cst_9 [1] : vector<1x256xf32> to vector<1xf32>
    %9 = vector.shape_cast %8 : vector<1xf32> to vector<1x1xf32>
    %c0_10 = arith.constant 0 : index
    %c0_11 = arith.constant 0 : index
    %10 = vector.load %arg4[%c0_10, %c0_11] : memref<1x1xf32, #tpu.memory_space<vmem>>, vector<1x1xf32>
    %11 = arith.addf %9, %10 : vector<1x1xf32>
    %c0_12 = arith.constant 0 : index
    %c0_13 = arith.constant 0 : index
    %12 = vector.load %arg6[%c0_12, %c0_13] : memref<1x1xf32, #tpu.memory_space<vmem>>, vector<1x1xf32>
    tpu.vector_store %arg6[%c0_12, %c0_13], %11 {strides = array<i32>} : memref<1x1xf32, #tpu.memory_space<vmem>>, vector<1x1xf32>,
    return
  }
}

</mosaic_0001>

<llo_original>
// kernel: tpu_custom_call.1
$region0: #{tpu_custom_call.1}
  #allocation0 [shape = 'u32[]', space=smem, size = 0x4, offset = 0x4, fixed_abs, tag = 'smem constant byte address 0x4 - core index']
  #allocation1 [shape = 'u32[144,128]{1,0:T(1,128)}', space=vmem, size = 0x12000, scoped, tag = 'internal scratch']
  #allocation2 [shape = 'f32[1,1]{1,0:T(1,128)S(1)}', space=vmem, size = 0x200, scoped, tag = 'scoped memory for tpu_custom_call.1']
  %s0 = inlined_call_operand.hbm [shape: f32[128,256], index: 0, kind: input, shape index: {}]
  %s1 = inlined_call_operand.vmem [shape: f32[1,256], index: 1, kind: input, shape index: {}]
  %s2 = inlined_call_operand.vmem [shape: f32[1,256], index: 2, kind: input, shape index: {}]
  %s3 = inlined_call_operand.vmem [shape: f32[1,128], index: 3, kind: input, shape index: {}]
  %s4 = inlined_call_operand.<no memory space> [shape: f32[1,1], index: 4, kind: input, shape index: {}]
  %s5 = inlined_call_operand.hbm [shape: f32[1,128], index: 5, kind: output, shape index: {0}]
  %s6 = inlined_call_operand.hbm [shape: f32[1,1], index: 6, kind: output, shape index: {1}]
  %7 = xla_tuple %s5, %s6
  %s8 = sld [smem:[#allocation0]]
  $region42: #{tpu_custom_call.1} parent=0
    _
  %s10 = ssub.s32 1, %s8
  %s11 = scalar_select 0, %s10, %s8
  %v12 = vstv %s4
  %13 = vst [vmem:[#allocation2] sm:$0x1] %v12
  $region1: #{tpu_custom_call.1} parent=0
    #allocation3 [shape = 'u8[131072]{0}', space=vmem, size = 0x20000, scoped, tag = 'input window, operand 0, single buffered']
    #allocation4 [shape = 's32[1]{0}', space=sflag, size = 0x4, scoped, tag = 'scoped memory for tpu_custom_call.1']
    #allocation5 [shape = 's32[1]{0}', space=sflag, size = 0x4, scoped, tag = 'scoped memory for tpu_custom_call.1']
    #allocation6 [shape = 'u8[512]{0}', space=vmem, size = 0x400, scoped, tag = 'output window, operand 0, single buffered']
    #allocation7 [shape = 'u8[512]{0}', space=vmem, size = 0x400, scoped, tag = 'output window, operand 1, single buffered']
    #allocation8 [shape = 's32[1]{0}', space=sflag, size = 0x4, scoped, tag = 'scoped memory for tpu_custom_call.1']
    %14 = vsyncpa [#allocation4], 0
    %15 = vsyncpa [#allocation5], 0
    %16 = vsyncpa [#allocation8], 0
    // Predicated region
    $region2: #{tpu_custom_call.1} parent=1 // pred_check
      _
    $region3: #{tpu_custom_call.1} parent=1 // pred_check_branch
      %18 = sbr.rel (0) target = $region5
    $region4: #{tpu_custom_call.1} parent=1 // pred_region
      %s20 = ssub.s32 4096, 4096
      %21 = vsyncadd [#allocation4], %s20
      %s22 = sshll.u32 [#allocation3], 4
      %s23 = int_to_ptr.vmem [resolvable:$true] %s22
      %28 = dma.hbm_to_vmem [thread:$0]  %s0, 4096, %s23, [#allocation4], 256, 256, 16
    $region5: #{tpu_custom_call.1} parent=1 // pred_fallthru
      _
    // Predicated region
    $region6: #{tpu_custom_call.1} parent=1 // pred_check
      _
    $region7: #{tpu_custom_call.1} parent=1 // pred_check_branch
      %30 = sbr.rel (0) target = $region9
    $region8: #{tpu_custom_call.1} parent=1 // pred_region
      _
    $region9: #{tpu_custom_call.1} parent=1 // pred_fallthru
      _
    // Predicated region
    $region10: #{tpu_custom_call.1} parent=1 // pred_check
      _
    $region11: #{tpu_custom_call.1} parent=1 // pred_check_branch
      %32 = sbr.rel (0) target = $region13
    $region12: #{tpu_custom_call.1} parent=1 // pred_region
      _
    $region13: #{tpu_custom_call.1} parent=1 // pred_fallthru
      _
    // Predicated region
    $region14: #{tpu_custom_call.1} parent=1 // pred_check
      _
    $region15: #{tpu_custom_call.1} parent=1 // pred_check_branch
      %34 = sbr.rel (0) target = $region17
    $region16: #{tpu_custom_call.1} parent=1 // pred_region
      _
    $region17: #{tpu_custom_call.1} parent=1 // pred_fallthru
      _
    // Predicated region
    $region18: #{tpu_custom_call.1} parent=1 // pred_check
      _
    $region19: #{tpu_custom_call.1} parent=1 // pred_check_branch
      %36 = sbr.rel (0) target = $region21
    $region20: #{tpu_custom_call.1} parent=1 // pred_region
      _
    $region21: #{tpu_custom_call.1} parent=1 // pred_fallthru
      _
    // Predicated region
    $region22: #{tpu_custom_call.1} parent=1 // pred_check
      _
    $region23: #{tpu_custom_call.1} parent=1 // pred_check_branch
      %38 = sbr.rel (0) target = $region25
    $region24: #{tpu_custom_call.1} parent=1 // pred_region
      %39 = dma.done [#allocation4], 4096
    $region25: #{tpu_custom_call.1} parent=1 // pred_fallthru
      _
    %v40 = vld [vmem:[%s2] sm:$0x3]
    %v41 = vld [vmem:[#allocation3] sm:$0xff]
    %v42 = vld [vmem:[#allocation3 + $0x8] sm:$0xff]
    %v43 = vld [vmem:[#allocation3 + $0x10] sm:$0xff]
    %v44 = vld [vmem:[#allocation3 + $0x18] sm:$0xff]
    %v45 = vld [vmem:[#allocation3 + $0x20] sm:$0xff]
    %v46 = vld [vmem:[#allocation3 + $0x28] sm:$0xff]
    %v47 = vld [vmem:[#allocation3 + $0x30] sm:$0xff]
    %v48 = vld [vmem:[#allocation3 + $0x38] sm:$0xff]
    %v49 = vld [vmem:[#allocation3 + $0x40] sm:$0xff]
    %v50 = vld [vmem:[#allocation3 + $0x48] sm:$0xff]
    %v51 = vld [vmem:[#allocation3 + $0x50] sm:$0xff]
    %v52 = vld [vmem:[#allocation3 + $0x58] sm:$0xff]
    %v53 = vld [vmem:[#allocation3 + $0x60] sm:$0xff]
    %v54 = vld [vmem:[#allocation3 + $0x68] sm:$0xff]
    %v55 = vld [vmem:[#allocation3 + $0x70] sm:$0xff]
    %v56 = vld [vmem:[#allocation3 + $0x78] sm:$0xff]
    %v57 = vld [vmem:[#allocation3 + $0x80] sm:$0xff]
    %v58 = vld [vmem:[#allocation3 + $0x88] sm:$0xff]
    %v59 = vld [vmem:[#allocation3 + $0x90] sm:$0xff]
    %v60 = vld [vmem:[#allocation3 + $0x98] sm:$0xff]
    %v61 = vld [vmem:[#allocation3 + $0xa0] sm:$0xff]
    %v62 = vld [vmem:[#allocation3 + $0xa8] sm:$0xff]
    %v63 = vld [vmem:[#allocation3 + $0xb0] sm:$0xff]
    %v64 = vld [vmem:[#allocation3 + $0xb8] sm:$0xff]
    %v65 = vld [vmem:[#allocation3 + $0xc0] sm:$0xff]
    %v66 = vld [vmem:[#allocation3 + $0xc8] sm:$0xff]
    %v67 = vld [vmem:[#allocation3 + $0xd0] sm:$0xff]
    %v68 = vld [vmem:[#allocation3 + $0xd8] sm:$0xff]
    %v69 = vld [vmem:[#allocation3 + $0xe0] sm:$0xff]
    %v70 = vld [vmem:[#allocation3 + $0xe8] sm:$0xff]
    %v71 = vld [vmem:[#allocation3 + $0xf0] sm:$0xff]
    %v72 = vld [vmem:[#allocation3 + $0xf8] sm:$0xff]
    %v73 = vld [vmem:[%s3] sm:$0x1]
    %v75 = vlaneseq
    %v76 = vshrl.u32 %v75, 7
    %v77 = vsub.s32 0, %v76
    %v78 = vrot.slane %v40, %v77
    %v79 = vlaneseq
    %v80 = vshrl.u32 %v79, 7
    %v81 = vsub.s32 1, %v80
    %v82 = vrot.slane %v40, %v81
    %85 = vmatprep.subr.mxu0 %v42
    %86 = vmatpush1.xpose.msra.mxu0 %v41
    %87 = vmatprep.subr.mxu0 %v44
    %88 = vmatpush1.xpose.msra.mxu0 %v43
    %89 = vmatprep.subr.mxu0 %v46
    %90 = vmatpush1.xpose.msra.mxu0 %v45
    %91 = vmatprep.subr.mxu0 %v48
    %92 = vmatpush1.xpose.msra.mxu0 %v47
    %93 = vmatprep.subr.mxu0 %v50
    %94 = vmatpush1.xpose.msra.mxu0 %v49
    %95 = vmatprep.subr.mxu0 %v52
    %96 = vmatpush1.xpose.msra.mxu0 %v51
    %97 = vmatprep.subr.mxu0 %v54
    %98 = vmatpush1.xpose.msra.mxu0 %v53
    %99 = vmatprep.subr.mxu0 %v56
    %100 = vmatpush1.xpose.msra.mxu0 %v55
    %101 = vmatprep.subr.mxu0 %v58
    %102 = vmatpush1.xpose.msra.mxu0 %v57
    %103 = vmatprep.subr.mxu0 %v60
    %104 = vmatpush1.xpose.msra.mxu0 %v59
    %105 = vmatprep.subr.mxu0 %v62
    %106 = vmatpush1.xpose.msra.mxu0 %v61
    %107 = vmatprep.subr.mxu0 %v64
    %108 = vmatpush1.xpose.msra.mxu0 %v63
    %109 = vmatprep.subr.mxu0 %v66
    %110 = vmatpush1.xpose.msra.mxu0 %v65
    %111 = vmatprep.subr.mxu0 %v68
    %112 = vmatpush1.xpose.msra.mxu0 %v67
    %113 = vmatprep.subr.mxu0 %v70
    %114 = vmatpush1.xpose.msra.mxu0 %v69
    %115 = vmatprep.subr.mxu0 %v72
    %116 = vmatpush1.xpose.msra.mxu0 %v71
    %117 = vmatprep.subr.mxu0 0.0
    %118 = vmatpush1.xpose.msra.mxu0 0.0
    %119 = vmatprep.subr.mxu0 0.0
    %120 = vmatpush1.xpose.msra.mxu0 0.0
    %121 = vmatprep.subr.mxu0 0.0
    %122 = vmatpush1.xpose.msra.mxu0 0.0
    %123 = vmatprep.subr.mxu0 0.0
    %124 = vmatpush1.xpose.msra.mxu0 0.0
    %125 = vmatprep.subr.mxu0 0.0
    %126 = vmatpush1.xpose.msra.mxu0 0.0
    %127 = vmatprep.subr.mxu0 0.0
    %128 = vmatpush1.xpose.msra.mxu0 0.0
    %129 = vmatprep.subr.mxu0 0.0
    %130 = vmatpush1.xpose.msra.mxu0 0.0
    %131 = vmatprep.subr.mxu0 0.0
    %132 = vmatpush1.xpose.msra.mxu0 0.0
    %133 = vmatprep.subr.mxu0 0.0
    %134 = vmatpush1.xpose.msra.mxu0 0.0
    %135 = vmatprep.subr.mxu0 0.0
    %136 = vmatpush1.xpose.msra.mxu0 0.0
    %137 = vmatprep.subr.mxu0 0.0
    %138 = vmatpush1.xpose.msra.mxu0 0.0
    %139 = vmatprep.subr.mxu0 0.0
    %140 = vmatpush1.xpose.msra.mxu0 0.0
    %141 = vmatprep.subr.mxu0 0.0
    %142 = vmatpush1.xpose.msra.mxu0 0.0
    %143 = vmatprep.subr.mxu0 0.0
    %144 = vmatpush1.xpose.msra.mxu0 0.0
    %145 = vmatprep.subr.mxu0 0.0
    %146 = vmatpush1.xpose.msra.mxu0 0.0
    %147 = vmatprep.subr.mxu0 0.0
    %148 = vmatpush1.xpose.msra.mxu0 0.0
    %149 = vmatprep.mubr.f32.mxu0 %v82
    %150 = vmatmul.mubr.f32.gmra.mrb[0].mxu0 %v78
    %v151 = vpop.f32.mrb[0].mxu0
    %v152 = vadd.f32 %v73, %v151
    %v153 = vpop.f32.mrb[0].mxu0
    %154 = vdwg.mxu0
    %155 = vst [vmem:[#allocation6] sm:$0x1] %v152
    %v156 = vld [vmem:[%s1] sm:$0x3]
    %v157 = vmul.f32 %v156, %v40
    %v159 = vlaneseq
    %v160 = vshrl.u32 %v159, 7
    %v161 = vsub.s32 0, %v160
    %v162 = vrot.slane %v157, %v161
    %v163 = vlaneseq
    %v164 = vshrl.u32 %v163, 7
    %v165 = vsub.s32 1, %v164
    %v166 = vrot.slane %v157, %v165
    %vm169 = vcmask 1040384
    %v170 = vsel %vm169, %v162, 0.0
    %v171 = vsel %vm169, %v166, 0.0
    %v172 = vadd.f32 %v170, %v171
    %173 = vadd.xlane.f32.xlu0 %v172
    %v174 = vpop.xlane.xlu0 %173
    %v175 = vld [vmem:[#allocation2] sm:$0x1]
    %v176 = vadd.f32 %v174, %v175
    %vm177 = vcmask 0
    %178 = vst.msk [vmem:[#allocation7] sm:$0x1] %vm177, %v176
    // Predicated region
    $region26: #{tpu_custom_call.1} parent=1 // pred_check
      _
    $region27: #{tpu_custom_call.1} parent=1 // pred_check_branch
      %180 = sbr.rel (0) target = $region29
    $region28: #{tpu_custom_call.1} parent=1 // pred_region
      %s182 = ssub.s32 16, 16
      %183 = vsyncadd [#allocation5], %s182
      %s185 = sshll.u32 [#allocation6], 4
      %s186 = int_to_ptr.vmem [resolvable:$true] %s185
      %188 = dma.vmem_to_hbm [thread:$0]  %s186, 16, %s5, [#allocation5]
    $region29: #{tpu_custom_call.1} parent=1 // pred_fallthru
      _
    // Predicated region
    $region30: #{tpu_custom_call.1} parent=1 // pred_check
      _
    $region31: #{tpu_custom_call.1} parent=1 // pred_check_branch
      %190 = sbr.rel (0) target = $region33
    $region32: #{tpu_custom_call.1} parent=1 // pred_region
      %s192 = ssub.s32 16, 16
      %193 = vsyncadd [#allocation8], %s192
      %s195 = sshll.u32 [#allocation7], 4
      %s196 = int_to_ptr.vmem [resolvable:$true] %s195
      %198 = dma.vmem_to_hbm [thread:$0]  %s196, 16, %s6, [#allocation8]
    $region33: #{tpu_custom_call.1} parent=1 // pred_fallthru
      _
    // Predicated region
    $region34: #{tpu_custom_call.1} parent=1 // pred_check
      _
    $region35: #{tpu_custom_call.1} parent=1 // pred_check_branch
      %200 = sbr.rel (0) target = $region37
    $region36: #{tpu_custom_call.1} parent=1 // pred_region
      %201 = dma.done [#allocation5], 16
    $region37: #{tpu_custom_call.1} parent=1 // pred_fallthru
      _
    // Predicated region
    $region38: #{tpu_custom_call.1} parent=1 // pred_check
      _
    $region39: #{tpu_custom_call.1} parent=1 // pred_check_branch
      %203 = sbr.rel (0) target = $region41
    $region40: #{tpu_custom_call.1} parent=1 // pred_region
      %204 = dma.done [#allocation8], 16
    $region41: #{tpu_custom_call.1} parent=1 // pred_fallthru
      _
    %205 = vsyncpa [#allocation4], 1
    %206 = vsyncpa [#allocation5], 1
    %207 = vsyncpa [#allocation8], 1

</llo_original>
